<compile_context>
chip_gen: v7x
topology: tpu7x:2x2x1
jax: 0.10.0
libtpu: 0.0.40
codegen_flags: <defaults>
</compile_context>

<pallas_src>
import functools

import jax
import jax.numpy as jnp
from jax.experimental import pallas as pl
from jax.experimental.pallas import tpu as pltpu

_BN_EPS = 1e-5
_DROP_P = 0.2


def _pad128(n):
    return ((n + 127) // 128) * 128


# ------------------------- fused kernel -------------------------

def _netfc_kernel(n_hidden, x_ref, *refs):
    """Entire netFC forward: n_hidden x [Linear+ReLU+BN(train)+Dropout(train)] + Linear.

    refs = (w0, b0, gamma0, beta0, mask0, ..., w_{n-1}, b_{n-1}, gamma_{n-1},
            beta_{n-1}, mask_{n-1}, w_final, b_final, o_ref)

    Weights are bf16, lane-dense (feature dims padded to 128); masks already carry the
    inverted-dropout 1/(1-p) scale.  All intermediate activations stay in VMEM.
    """
    o_ref = refs[-1]
    params = refs[:-1]

    h = x_ref[...]                                              # (B, Din_pad) f32
    idx = 0
    for _ in range(n_hidden):
        w_ref, b_ref, gamma_ref, beta_ref, mask_ref = params[idx:idx + 5]
        idx += 5
        # Linear: bf16 inputs on the MXU, f32 accumulation, f32 bias add.
        h = jnp.dot(h.astype(w_ref.dtype), w_ref[...],
                    preferred_element_type=jnp.float32) + b_ref[...]
        # ReLU
        h = jnp.maximum(h, 0.0)
        # BatchNorm1d, training mode: batch stats over axis 0, biased variance.
        # Single-pass variance E[h^2] - mean^2, clamped >= 0 before rsqrt.
        mean = jnp.mean(h, axis=0, keepdims=True)               # (1, Dout_pad)
        var = jnp.maximum(jnp.mean(h * h, axis=0, keepdims=True) - mean * mean, 0.0)
        h = (h - mean) * jax.lax.rsqrt(var + _BN_EPS)
        h = h * gamma_ref[...] + beta_ref[...]
        # Dropout(p=0.2), training mode: mask values are {0, 1/(1-p)}.
        h = h * mask_ref[...]

    # Final plain Linear
    w_ref, b_ref = params[idx], params[idx + 1]
    o_ref[...] = jnp.dot(h.astype(w_ref.dtype), w_ref[...],
                         preferred_element_type=jnp.float32) + b_ref[...]


# ------------------------- wrapper -------------------------

def netfc_forward(params_flat, x, output_dim, key):
    """params_flat: [w0,b0,g0,be0, ..., w_final,b_final] (lane-padded, w in bf16).
    x: (B, input_dim) f32.  key: jax PRNG key (vary per forward call for fresh dropout
    masks).  Returns (B, output_dim) f32."""
    n_hidden = (len(params_flat) - 2) // 4
    B, d_in = x.shape
    d_in_pad = params_flat[0].shape[0]
    out_pad = params_flat[-2].shape[1]
    keep = 1.0 - _DROP_P

    # Zero-pad input features to the lane-dense width expected by the first weight.
    x_pad = jnp.zeros((B, d_in_pad), jnp.float32).at[:, :d_in].set(x)

    keys = jax.random.split(key, n_hidden) if n_hidden > 0 else []
    kernel_args = [x_pad]
    flops = 0
    for i in range(n_hidden):
        w, b, g, be = params_flat[4 * i:4 * i + 4]
        d_out_pad = w.shape[1]
        flops += 2 * B * w.shape[0] * d_out_pad
        mask = jnp.where(jax.random.bernoulli(keys[i], keep, (B, d_out_pad)),
                         1.0 / keep, 0.0).astype(jnp.float32)
        kernel_args += [w, b, g, be, mask]
    w_f, b_f = params_flat[-2], params_flat[-1]
    flops += 2 * B * w_f.shape[0] * w_f.shape[1]
    kernel_args += [w_f, b_f]

    out_bytes = B * out_pad * 4
    total_bytes = sum(int(a.size) * a.dtype.itemsize for a in kernel_args) + out_bytes
    # Everything is resident at once (no grid); give the compiler explicit headroom,
    # staying well under v7x's 64 MiB / v5e's scoped default.
    vmem_limit = int(min(64 * 1024 * 1024, max(4 * 1024 * 1024, 2 * total_bytes)))

    kernel = functools.partial(_netfc_kernel, n_hidden)
    vmem_spec = pl.BlockSpec(memory_space=pltpu.MemorySpace.VMEM)
    out_padded = pl.pallas_call(
        kernel,
        out_shape=jax.ShapeDtypeStruct((B, out_pad), jnp.float32),
        in_specs=[vmem_spec] * len(kernel_args),
        out_specs=vmem_spec,
        compiler_params=pltpu.CompilerParams(vmem_limit_bytes=vmem_limit),
        cost_estimate=pl.CostEstimate(
            flops=flops,
            transcendentals=sum(params_flat[4 * i].shape[1] for i in range(n_hidden)),
            bytes_accessed=total_bytes),
    )(*kernel_args)
    # Slice the lane-padded output back to the real feature width.
    return out_padded[:, :output_dim]


# ------------------------- parameter init -------------------------

def init_netfc_params(key, input_dim, hidden_dims, output_dim):
    """PyTorch-default init: Linear W,b ~ U(-1/sqrt(fan_in), 1/sqrt(fan_in)); BN gamma=1,
    beta=0.  All feature dims are zero-padded to multiples of 128 (lane-dense tiles,
    unmasked stores); weights are stored bf16 for the MXU, everything else f32."""
    sizes = [input_dim] + list(hidden_dims) + [output_dim]
    flat = []
    for i in range(len(sizes) - 1):
        d_in, d_out = sizes[i], sizes[i + 1]
        d_in_p, d_out_p = _pad128(d_in), _pad128(d_out)
        key, kw, kb = jax.random.split(key, 3)
        bound = 1.0 / (d_in ** 0.5)
        w = jax.random.uniform(kw, (d_in, d_out), jnp.float32, -bound, bound)
        b = jax.random.uniform(kb, (d_out,), jnp.float32, -bound, bound)
        w_p = (jnp.zeros((d_in_p, d_out_p), jnp.float32)
               .at[:d_in, :d_out].set(w).astype(jnp.bfloat16))
        b_p = jnp.zeros((1, d_out_p), jnp.float32).at[0, :d_out].set(b)
        flat += [w_p, b_p]
        if i < len(sizes) - 2:  # layerFC: BN affine params (padded cols stay 0)
            gamma = jnp.zeros((1, d_out_p), jnp.float32).at[0, :d_out].set(1.0)
            beta = jnp.zeros((1, d_out_p), jnp.float32)
            flat += [gamma, beta]
    return flat


# ------------------------- main -------------------------

if __name__ == "__main__":
    # netFC(input_dim=16, hidden_dims=[32, 64], output_dim=8), batch=8
    B, input_dim, hidden_dims, output_dim = 8, 16, [32, 64], 8

    key = jax.random.PRNGKey(0)
    key, kx, kinit, kdrop = jax.random.split(key, 4)
    x = jax.random.normal(kx, (B, input_dim), jnp.float32)

    params = init_netfc_params(kinit, input_dim, hidden_dims, output_dim)

    # NOTE: vary `kdrop` per training step to get fresh dropout masks each call
    # (statistical, not bitwise, equivalence with PyTorch's RNG).
    out = netfc_forward(params, x, output_dim, kdrop)
    out = jax.block_until_ready(out)
    assert out.shape == (B, output_dim) and out.dtype == jnp.float32
    print("KERNEL_OK")
</pallas_src>

<mosaic_0001>
module attributes {stable_mosaic.version = 11 : i64} {
  func.func @_netfc_kernel(%arg0: memref<8x128xf32, #tpu.memory_space<vmem>>, %arg1: memref<128x128xbf16, #tpu.memory_space<vmem>>, %arg2: memref<1x128xf32, #tpu.memory_space<vmem>>, %arg3: memref<1x128xf32, #tpu.memory_space<vmem>>, %arg4: memref<1x128xf32, #tpu.memory_space<vmem>>, %arg5: memref<8x128xf32, #tpu.memory_space<vmem>>, %arg6: memref<128x128xbf16, #tpu.memory_space<vmem>>, %arg7: memref<1x128xf32, #tpu.memory_space<vmem>>, %arg8: memref<1x128xf32, #tpu.memory_space<vmem>>, %arg9: memref<1x128xf32, #tpu.memory_space<vmem>>, %arg10: memref<8x128xf32, #tpu.memory_space<vmem>>, %arg11: memref<128x128xbf16, #tpu.memory_space<vmem>>, %arg12: memref<1x128xf32, #tpu.memory_space<vmem>>, %arg13: memref<8x128xf32, #tpu.memory_space<vmem>>) attributes {dimension_semantics = [], scalar_prefetch = 0 : i64, scratch_operands = 0 : i64, tpu.core_type = #tpu.core_type<tc>} {
    %c0 = arith.constant 0 : index
    %c0_0 = arith.constant 0 : index
    %0 = vector.load %arg0[%c0, %c0_0] : memref<8x128xf32, #tpu.memory_space<vmem>>, vector<8x128xf32>
    %1 = arith.truncf %0 : vector<8x128xf32> to vector<8x128xbf16>
    %c0_1 = arith.constant 0 : index
    %c0_2 = arith.constant 0 : index
    %2 = vector.load %arg1[%c0_1, %c0_2] : memref<128x128xbf16, #tpu.memory_space<vmem>>, vector<128x128xbf16>
    %cst = arith.constant dense<0.000000e+00> : vector<8x128xf32>
    %3 = tpu.matmul %1, %2, %cst {dimension_numbers = #tpu.dot_dimension_numbers<[1], [0], [0], [1], [0, 0, 1, 1], [], []>} : vector<8x128xbf16>, vector<128x128xbf16>, vector<8x128xf32> -> vector<8x128xf32>
    %c0_3 = arith.constant 0 : index
    %c0_4 = arith.constant 0 : index
    %4 = vector.load %arg2[%c0_3, %c0_4] : memref<1x128xf32, #tpu.memory_space<vmem>>, vector<1x128xf32>
    %5 = vector.broadcast %4 : vector<1x128xf32> to vector<8x128xf32>
    %6 = arith.addf %3, %5 : vector<8x128xf32>
    %cst_5 = arith.constant 0.000000e+00 : f32
    %7 = vector.broadcast %cst_5 : f32 to vector<8x128xf32>
    %8 = arith.maximumf %6, %7 : vector<8x128xf32>
    %cst_6 = arith.constant dense<0.000000e+00> : vector<128xf32>
    %9 = vector.multi_reduction <add>, %8, %cst_6 [0] : vector<8x128xf32> to vector<128xf32>
    %10 = vector.shape_cast %9 : vector<128xf32> to vector<1x128xf32>
    %cst_7 = arith.constant 8.000000e+00 : f32
    %11 = vector.broadcast %cst_7 : f32 to vector<1x128xf32>
    %12 = arith.divf %10, %11 : vector<1x128xf32>
    %13 = arith.mulf %8, %8 : vector<8x128xf32>
    %cst_8 = arith.constant dense<0.000000e+00> : vector<128xf32>
    %14 = vector.multi_reduction <add>, %13, %cst_8 [0] : vector<8x128xf32> to vector<128xf32>
    %15 = vector.shape_cast %14 : vector<128xf32> to vector<1x128xf32>
    %cst_9 = arith.constant 8.000000e+00 : f32
    %16 = vector.broadcast %cst_9 : f32 to vector<1x128xf32>
    %17 = arith.divf %15, %16 : vector<1x128xf32>
    %18 = arith.mulf %12, %12 : vector<1x128xf32>
    %19 = arith.subf %17, %18 : vector<1x128xf32>
    %cst_10 = arith.constant 0.000000e+00 : f32
    %20 = vector.broadcast %cst_10 : f32 to vector<1x128xf32>
    %21 = arith.maximumf %19, %20 : vector<1x128xf32>
    %22 = vector.broadcast %12 : vector<1x128xf32> to vector<8x128xf32>
    %23 = arith.subf %8, %22 : vector<8x128xf32>
    %cst_11 = arith.constant 9.99999974E-6 : f32
    %24 = vector.broadcast %cst_11 : f32 to vector<1x128xf32>
    %25 = arith.addf %21, %24 : vector<1x128xf32>
    %26 = math.rsqrt %25 : vector<1x128xf32>
    %27 = vector.broadcast %26 : vector<1x128xf32> to vector<8x128xf32>
    %28 = arith.mulf %23, %27 : vector<8x128xf32>
    %c0_12 = arith.constant 0 : index
    %c0_13 = arith.constant 0 : index
    %29 = vector.load %arg3[%c0_12, %c0_13] : memref<1x128xf32, #tpu.memory_space<vmem>>, vector<1x128xf32>
    %30 = vector.broadcast %29 : vector<1x128xf32> to vector<8x128xf32>
    %31 = arith.mulf %28, %30 : vector<8x128xf32>
    %c0_14 = arith.constant 0 : index
    %c0_15 = arith.constant 0 : index
    %32 = vector.load %arg4[%c0_14, %c0_15] : memref<1x128xf32, #tpu.memory_space<vmem>>, vector<1x128xf32>
    %33 = vector.broadcast %32 : vector<1x128xf32> to vector<8x128xf32>
    %34 = arith.addf %31, %33 : vector<8x128xf32>
    %c0_16 = arith.constant 0 : index
    %c0_17 = arith.constant 0 : index
    %35 = vector.load %arg5[%c0_16, %c0_17] : memref<8x128xf32, #tpu.memory_space<vmem>>, vector<8x128xf32>
    %36 = arith.mulf %34, %35 : vector<8x128xf32>
    %37 = arith.truncf %36 : vector<8x128xf32> to vector<8x128xbf16>
    %c0_18 = arith.constant 0 : index
    %c0_19 = arith.constant 0 : index
    %38 = vector.load %arg6[%c0_18, %c0_19] : memref<128x128xbf16, #tpu.memory_space<vmem>>, vector<128x128xbf16>
    %cst_20 = arith.constant dense<0.000000e+00> : vector<8x128xf32>
    %39 = tpu.matmul %37, %38, %cst_20 {dimension_numbers = #tpu.dot_dimension_numbers<[1], [0], [0], [1], [0, 0, 1, 1], [], []>} : vector<8x128xbf16>, vector<128x128xbf16>, vector<8x128xf32> -> vector<8x128xf32>
    %c0_21 = arith.constant 0 : index
    %c0_22 = arith.constant 0 : index
    %40 = vector.load %arg7[%c0_21, %c0_22] : memref<1x128xf32, #tpu.memory_space<vmem>>, vector<1x128xf32>
    %41 = vector.broadcast %40 : vector<1x128xf32> to vector<8x128xf32>
    %42 = arith.addf %39, %41 : vector<8x128xf32>
    %cst_23 = arith.constant 0.000000e+00 : f32
    %43 = vector.broadcast %cst_23 : f32 to vector<8x128xf32>
    %44 = arith.maximumf %42, %43 : vector<8x128xf32>
    %cst_24 = arith.constant dense<0.000000e+00> : vector<128xf32>
    %45 = vector.multi_reduction <add>, %44, %cst_24 [0] : vector<8x128xf32> to vector<128xf32>
    %46 = vector.shape_cast %45 : vector<128xf32> to vector<1x128xf32>
    %cst_25 = arith.constant 8.000000e+00 : f32
    %47 = vector.broadcast %cst_25 : f32 to vector<1x128xf32>
    %48 = arith.divf %46, %47 : vector<1x128xf32>
    %49 = arith.mulf %44, %44 : vector<8x128xf32>
    %cst_26 = arith.constant dense<0.000000e+00> : vector<128xf32>
    %50 = vector.multi_reduction <add>, %49, %cst_26 [0] : vector<8x128xf32> to vector<128xf32>
    %51 = vector.shape_cast %50 : vector<128xf32> to vector<1x128xf32>
    %cst_27 = arith.constant 8.000000e+00 : f32
    %52 = vector.broadcast %cst_27 : f32 to vector<1x128xf32>
    %53 = arith.divf %51, %52 : vector<1x128xf32>
    %54 = arith.mulf %48, %48 : vector<1x128xf32>
    %55 = arith.subf %53, %54 : vector<1x128xf32>
    %cst_28 = arith.constant 0.000000e+00 : f32
    %56 = vector.broadcast %cst_28 : f32 to vector<1x128xf32>
    %57 = arith.maximumf %55, %56 : vector<1x128xf32>
    %58 = vector.broadcast %48 : vector<1x128xf32> to vector<8x128xf32>
    %59 = arith.subf %44, %58 : vector<8x128xf32>
    %cst_29 = arith.constant 9.99999974E-6 : f32
    %60 = vector.broadcast %cst_29 : f32 to vector<1x128xf32>
    %61 = arith.addf %57, %60 : vector<1x128xf32>
    %62 = math.rsqrt %61 : vector<1x128xf32>
    %63 = vector.broadcast %62 : vector<1x128xf32> to vector<8x128xf32>
    %64 = arith.mulf %59, %63 : vector<8x128xf32>
    %c0_30 = arith.constant 0 : index
    %c0_31 = arith.constant 0 : index
    %65 = vector.load %arg8[%c0_30, %c0_31] : memref<1x128xf32, #tpu.memory_space<vmem>>, vector<1x128xf32>
    %66 = vector.broadcast %65 : vector<1x128xf32> to vector<8x128xf32>
    %67 = arith.mulf %64, %66 : vector<8x128xf32>
    %c0_32 = arith.constant 0 : index
    %c0_33 = arith.constant 0 : index
    %68 = vector.load %arg9[%c0_32, %c0_33] : memref<1x128xf32, #tpu.memory_space<vmem>>, vector<1x128xf32>
    %69 = vector.broadcast %68 : vector<1x128xf32> to vector<8x128xf32>
    %70 = arith.addf %67, %69 : vector<8x128xf32>
    %c0_34 = arith.constant 0 : index
    %c0_35 = arith.constant 0 : index
    %71 = vector.load %arg10[%c0_34, %c0_35] : memref<8x128xf32, #tpu.memory_space<vmem>>, vector<8x128xf32>
    %72 = arith.mulf %70, %71 : vector<8x128xf32>
    %73 = arith.truncf %72 : vector<8x128xf32> to vector<8x128xbf16>
    %c0_36 = arith.constant 0 : index
    %c0_37 = arith.constant 0 : index
    %74 = vector.load %arg11[%c0_36, %c0_37] : memref<128x128xbf16, #tpu.memory_space<vmem>>, vector<128x128xbf16>
    %cst_38 = arith.constant dense<0.000000e+00> : vector<8x128xf32>
    %75 = tpu.matmul %73, %74, %cst_38 {dimension_numbers = #tpu.dot_dimension_numbers<[1], [0], [0], [1], [0, 0, 1, 1], [], []>} : vector<8x128xbf16>, vector<128x128xbf16>, vector<8x128xf32> -> vector<8x128xf32>
    %c0_39 = arith.constant 0 : index
    %c0_40 = arith.constant 0 : index
    %76 = vector.load %arg12[%c0_39, %c0_40] : memref<1x128xf32, #tpu.memory_space<vmem>>, vector<1x128xf32>
    %77 = vector.broadcast %76 : vector<1x128xf32> to vector<8x128xf32>
    %78 = arith.addf %75, %77 : vector<8x128xf32>
    %c0_41 = arith.constant 0 : index
    %c0_42 = arith.constant 0 : index
    %79 = vector.load %arg13[%c0_41, %c0_42] : memref<8x128xf32, #tpu.memory_space<vmem>>, vector<8x128xf32>
    tpu.vector_store %arg13[%c0_41, %c0_42], %78 {strides = array<i32>} : memref<8x128xf32, #tpu.memory_space<vmem>>, vector<8x128xf32>,
    return
  }
}

</mosaic_0001>

<llo_original>
// kernel: tpu_custom_call.1
$region0: #{tpu_custom_call.1}
  #allocation0 [shape = 'u32[]', space=smem, size = 0x4, offset = 0x4, fixed_abs, tag = 'smem constant byte address 0x4 - core index']
  #allocation1 [shape = 'u32[144,128]{1,0:T(1,128)}', space=vmem, size = 0x12000, scoped, tag = 'internal scratch']
  %s0 = inlined_call_operand.hbm [shape: f32[8,128], index: 0, kind: input, shape index: {}]
  %s1 = inlined_call_operand.hbm [shape: bf16[128,128], index: 1, kind: input, shape index: {}]
  %s2 = inlined_call_operand.vmem [shape: f32[1,128], index: 2, kind: input, shape index: {}]
  %s3 = inlined_call_operand.vmem [shape: f32[1,128], index: 3, kind: input, shape index: {}]
  %s4 = inlined_call_operand.hbm [shape: f32[1,128], index: 4, kind: input, shape index: {}]
  %s5 = inlined_call_operand.vmem [shape: f32[8,128], index: 5, kind: input, shape index: {}]
  %s6 = inlined_call_operand.hbm [shape: bf16[128,128], index: 6, kind: input, shape index: {}]
  %s7 = inlined_call_operand.vmem [shape: f32[1,128], index: 7, kind: input, shape index: {}]
  %s8 = inlined_call_operand.vmem [shape: f32[1,128], index: 8, kind: input, shape index: {}]
  %s9 = inlined_call_operand.vmem [shape: f32[1,128], index: 9, kind: input, shape index: {}]
  %s10 = inlined_call_operand.vmem [shape: f32[8,128], index: 10, kind: input, shape index: {}]
  %s11 = inlined_call_operand.hbm [shape: bf16[128,128], index: 11, kind: input, shape index: {}]
  %s12 = inlined_call_operand.vmem [shape: f32[1,128], index: 12, kind: input, shape index: {}]
  %s13 = inlined_call_operand.hbm [shape: f32[8,128], index: 13, kind: output, shape index: {}]
  %s14 = sld [smem:[#allocation0]]
  $region82: #{tpu_custom_call.1} parent=0
    _
  %s16 = ssub.s32 1, %s14
  %s17 = scalar_select 0, %s16, %s14
  $region1: #{tpu_custom_call.1} parent=0
    #allocation2 [shape = 'u8[4096]{0}', space=vmem, size = 0x1000, scoped, tag = 'input window, operand 0, single buffered']
    #allocation3 [shape = 's32[1]{0}', space=sflag, size = 0x4, scoped, tag = 'scoped memory for tpu_custom_call.1']
    #allocation4 [shape = 's32[1]{0}', space=sflag, size = 0x4, scoped, tag = 'scoped memory for tpu_custom_call.1']
    #allocation5 [shape = 'u8[32768]{0}', space=vmem, size = 0x8000, scoped, tag = 'input window, operand 1, single buffered']
    #allocation6 [shape = 's32[1]{0}', space=sflag, size = 0x4, scoped, tag = 'scoped memory for tpu_custom_call.1']
    #allocation7 [shape = 'u8[512]{0}', space=vmem, size = 0x400, scoped, tag = 'input window, operand 4, single buffered']
    #allocation8 [shape = 'u8[32768]{0}', space=vmem, size = 0x8000, scoped, tag = 'input window, operand 6, single buffered']
    #allocation9 [shape = 's32[1]{0}', space=sflag, size = 0x4, scoped, tag = 'scoped memory for tpu_custom_call.1']
    #allocation10 [shape = 'u8[32768]{0}', space=vmem, size = 0x8000, scoped, tag = 'input window, operand 11, single buffered']
    #allocation11 [shape = 'u8[4096]{0}', space=vmem, size = 0x1000, scoped, tag = 'output window, operand 0, single buffered']
    %18 = vsyncpa [#allocation3], 0
    %19 = vsyncpa [#allocation6], 0
    %20 = vsyncpa [#allocation9], 0
    %21 = vsyncpa [#allocation4], 0
    // Predicated region
    $region2: #{tpu_custom_call.1} parent=1 // pred_check
      _
    $region3: #{tpu_custom_call.1} parent=1 // pred_check_branch
      %23 = sbr.rel (0) target = $region5
    $region4: #{tpu_custom_call.1} parent=1 // pred_region
      %s25 = ssub.s32 128, 128
      %26 = vsyncadd [#allocation3], %s25
      %s28 = sshll.u32 [#allocation2], 4
      %s29 = int_to_ptr.vmem [resolvable:$true] %s28
      %31 = dma.hbm_to_vmem [thread:$0]  %s0, 128, %s29, [#allocation3]
    $region5: #{tpu_custom_call.1} parent=1 // pred_fallthru
      _
    // Predicated region
    $region6: #{tpu_custom_call.1} parent=1 // pred_check
      _
    $region7: #{tpu_custom_call.1} parent=1 // pred_check_branch
      %33 = sbr.rel (0) target = $region9
    $region8: #{tpu_custom_call.1} parent=1 // pred_region
      %s35 = ssub.s32 1024, 1024
      %36 = vsyncadd [#allocation6], %s35
      %s37 = sshll.u32 [#allocation5], 4
      %s38 = int_to_ptr.vmem [resolvable:$true] %s37
      %43 = dma.hbm_to_vmem [thread:$0]  %s1, 1024, %s38, [#allocation6], 64, 64, 4
    $region9: #{tpu_custom_call.1} parent=1 // pred_fallthru
      _
    // Predicated region
    $region10: #{tpu_custom_call.1} parent=1 // pred_check
      _
    $region11: #{tpu_custom_call.1} parent=1 // pred_check_branch
      %45 = sbr.rel (0) target = $region13
    $region12: #{tpu_custom_call.1} parent=1 // pred_region
      _
    $region13: #{tpu_custom_call.1} parent=1 // pred_fallthru
      _
    // Predicated region
    $region14: #{tpu_custom_call.1} parent=1 // pred_check
      _
    $region15: #{tpu_custom_call.1} parent=1 // pred_check_branch
      %47 = sbr.rel (0) target = $region17
    $region16: #{tpu_custom_call.1} parent=1 // pred_region
      _
    $region17: #{tpu_custom_call.1} parent=1 // pred_fallthru
      _
    // Predicated region
    $region18: #{tpu_custom_call.1} parent=1 // pred_check
      _
    $region19: #{tpu_custom_call.1} parent=1 // pred_check_branch
      %49 = sbr.rel (0) target = $region21
    $region20: #{tpu_custom_call.1} parent=1 // pred_region
      %s51 = ssub.s32 16, 16
      %52 = vsyncadd [#allocation6], %s51
      %s54 = sshll.u32 [#allocation7], 4
      %s55 = int_to_ptr.vmem [resolvable:$true] %s54
      %57 = dma.hbm_to_vmem [thread:$0]  %s4, 16, %s55, [#allocation6]
    $region21: #{tpu_custom_call.1} parent=1 // pred_fallthru
      _
    // Predicated region
    $region22: #{tpu_custom_call.1} parent=1 // pred_check
      _
    $region23: #{tpu_custom_call.1} parent=1 // pred_check_branch
      %59 = sbr.rel (0) target = $region25
    $region24: #{tpu_custom_call.1} parent=1 // pred_region
      _
    $region25: #{tpu_custom_call.1} parent=1 // pred_fallthru
      _
    // Predicated region
    $region26: #{tpu_custom_call.1} parent=1 // pred_check
      _
    $region27: #{tpu_custom_call.1} parent=1 // pred_check_branch
      %61 = sbr.rel (0) target = $region29
    $region28: #{tpu_custom_call.1} parent=1 // pred_region
      %s63 = ssub.s32 1024, 1024
      %64 = vsyncadd [#allocation9], %s63
      %s65 = sshll.u32 [#allocation8], 4
      %s66 = int_to_ptr.vmem [resolvable:$true] %s65
      %71 = dma.hbm_to_vmem [thread:$0]  %s6, 1024, %s66, [#allocation9], 64, 64, 4
    $region29: #{tpu_custom_call.1} parent=1 // pred_fallthru
      _
    // Predicated region
    $region30: #{tpu_custom_call.1} parent=1 // pred_check
      _
    $region31: #{tpu_custom_call.1} parent=1 // pred_check_branch
      %73 = sbr.rel (0) target = $region33
    $region32: #{tpu_custom_call.1} parent=1 // pred_region
      _
    $region33: #{tpu_custom_call.1} parent=1 // pred_fallthru
      _
    // Predicated region
    $region34: #{tpu_custom_call.1} parent=1 // pred_check
      _
    $region35: #{tpu_custom_call.1} parent=1 // pred_check_branch
      %75 = sbr.rel (0) target = $region37
    $region36: #{tpu_custom_call.1} parent=1 // pred_region
      _
    $region37: #{tpu_custom_call.1} parent=1 // pred_fallthru
      _
    // Predicated region
    $region38: #{tpu_custom_call.1} parent=1 // pred_check
      _
    $region39: #{tpu_custom_call.1} parent=1 // pred_check_branch
      %77 = sbr.rel (0) target = $region41
    $region40: #{tpu_custom_call.1} parent=1 // pred_region
      _
    $region41: #{tpu_custom_call.1} parent=1 // pred_fallthru
      _
    // Predicated region
    $region42: #{tpu_custom_call.1} parent=1 // pred_check
      _
    $region43: #{tpu_custom_call.1} parent=1 // pred_check_branch
      %79 = sbr.rel (0) target = $region45
    $region44: #{tpu_custom_call.1} parent=1 // pred_region
      _
    $region45: #{tpu_custom_call.1} parent=1 // pred_fallthru
      _
    // Predicated region
    $region46: #{tpu_custom_call.1} parent=1 // pred_check
      _
    $region47: #{tpu_custom_call.1} parent=1 // pred_check_branch
      %81 = sbr.rel (0) target = $region49
    $region48: #{tpu_custom_call.1} parent=1 // pred_region
      %s83 = ssub.s32 1024, 1024
      %84 = vsyncadd [#allocation9], %s83
      %s85 = sshll.u32 [#allocation10], 4
      %s86 = int_to_ptr.vmem [resolvable:$true] %s85
      %91 = dma.hbm_to_vmem [thread:$0]  %s11, 1024, %s86, [#allocation9], 64, 64, 4
    $region49: #{tpu_custom_call.1} parent=1 // pred_fallthru
      _
    // Predicated region
    $region50: #{tpu_custom_call.1} parent=1 // pred_check
      _
    $region51: #{tpu_custom_call.1} parent=1 // pred_check_branch
      %93 = sbr.rel (0) target = $region53
    $region52: #{tpu_custom_call.1} parent=1 // pred_region
      _
    $region53: #{tpu_custom_call.1} parent=1 // pred_fallthru
      _
    // Predicated region
    $region54: #{tpu_custom_call.1} parent=1 // pred_check
      _
    $region55: #{tpu_custom_call.1} parent=1 // pred_check_branch
      %95 = sbr.rel (0) target = $region57
    $region56: #{tpu_custom_call.1} parent=1 // pred_region
      %96 = dma.done [#allocation3], 128
    $region57: #{tpu_custom_call.1} parent=1 // pred_fallthru
      _
    // Predicated region
    $region58: #{tpu_custom_call.1} parent=1 // pred_check
      _
    $region59: #{tpu_custom_call.1} parent=1 // pred_check_branch
      %98 = sbr.rel (0) target = $region61
    $region60: #{tpu_custom_call.1} parent=1 // pred_region
      %99 = dma.done [#allocation6], 1024
    $region61: #{tpu_custom_call.1} parent=1 // pred_fallthru
      _
    // Predicated region
    $region62: #{tpu_custom_call.1} parent=1 // pred_check
      _
    $region63: #{tpu_custom_call.1} parent=1 // pred_check_branch
      %101 = sbr.rel (0) target = $region65
    $region64: #{tpu_custom_call.1} parent=1 // pred_region
      %102 = dma.done [#allocation6], 16
    $region65: #{tpu_custom_call.1} parent=1 // pred_fallthru
      _
    // Predicated region
    $region66: #{tpu_custom_call.1} parent=1 // pred_check
      _
    $region67: #{tpu_custom_call.1} parent=1 // pred_check_branch
      %104 = sbr.rel (0) target = $region69
    $region68: #{tpu_custom_call.1} parent=1 // pred_region
      %105 = dma.done [#allocation9], 1024
    $region69: #{tpu_custom_call.1} parent=1 // pred_fallthru
      _
    // Predicated region
    $region70: #{tpu_custom_call.1} parent=1 // pred_check
      _
    $region71: #{tpu_custom_call.1} parent=1 // pred_check_branch
      %107 = sbr.rel (0) target = $region73
    $region72: #{tpu_custom_call.1} parent=1 // pred_region
      %108 = dma.done [#allocation9], 1024
    $region73: #{tpu_custom_call.1} parent=1 // pred_fallthru
      _
    %v110 = vld [vmem:[#allocation2] sm:$0xff]
    %v111 = vpack.c.bf16 %v110, %v110
    %v112 = vld [vmem:[#allocation5] sm:$0xf]
    %v113 = vld [vmem:[#allocation5 + $0x4] sm:$0xf]
    %v114 = vld [vmem:[#allocation5 + $0x8] sm:$0xf]
    %v115 = vld [vmem:[#allocation5 + $0xc] sm:$0xf]
    %v116 = vld [vmem:[#allocation5 + $0x10] sm:$0xf]
    %v117 = vld [vmem:[#allocation5 + $0x14] sm:$0xf]
    %v118 = vld [vmem:[#allocation5 + $0x18] sm:$0xf]
    %v119 = vld [vmem:[#allocation5 + $0x1c] sm:$0xf]
    %v120 = vld [vmem:[#allocation5 + $0x20] sm:$0xf]
    %v121 = vld [vmem:[#allocation5 + $0x24] sm:$0xf]
    %v122 = vld [vmem:[#allocation5 + $0x28] sm:$0xf]
    %v123 = vld [vmem:[#allocation5 + $0x2c] sm:$0xf]
    %v124 = vld [vmem:[#allocation5 + $0x30] sm:$0xf]
    %v125 = vld [vmem:[#allocation5 + $0x34] sm:$0xf]
    %v126 = vld [vmem:[#allocation5 + $0x38] sm:$0xf]
    %v127 = vld [vmem:[#allocation5 + $0x3c] sm:$0xf]
    %v128 = vld [vmem:[%s2] sm:$0x1]
    %v130 = vlaneseq
    %v131 = vshrl.u32 %v130, 7
    %v132 = vsub.s32 0, %v131
    %v133 = vrot.slane %v128, %v132
    %v151 = vunpack.c.l.b16 %v112
    %v152 = vunpack.c.l.b16 %v113
    %v153 = vunpack.c.l.b16 %v114
    %v154 = vunpack.c.l.b16 %v115
    %v155 = vunpack.c.l.b16 %v116
    %v156 = vunpack.c.l.b16 %v117
    %v157 = vunpack.c.l.b16 %v118
    %v158 = vunpack.c.l.b16 %v119
    %v159 = vunpack.c.l.b16 %v120
    %v160 = vunpack.c.l.b16 %v121
    %v161 = vunpack.c.l.b16 %v122
    %v162 = vunpack.c.l.b16 %v123
    %v163 = vunpack.c.l.b16 %v124
    %v164 = vunpack.c.l.b16 %v125
    %v165 = vunpack.c.l.b16 %v126
    %v166 = vunpack.c.l.b16 %v127
    %v167 = vpack.c.b16 %v152, %v151
    %v168 = vpack.c.b16 %v154, %v153
    %v169 = vpack.c.b16 %v156, %v155
    %v170 = vpack.c.b16 %v158, %v157
    %v171 = vpack.c.b16 %v160, %v159
    %v172 = vpack.c.b16 %v162, %v161
    %v173 = vpack.c.b16 %v164, %v163
    %v174 = vpack.c.b16 %v166, %v165
    %183 = vmatprep.subr.bf16.mxu0 0
    %184 = vmatpush1.bf16.msra.mxu0 %v167
    %185 = vmatprep.subr.bf16.mxu0 0
    %186 = vmatpush1.bf16.msra.mxu0 %v168
    %187 = vmatprep.subr.bf16.mxu0 0
    %188 = vmatpush1.bf16.msra.mxu0 %v169
    %189 = vmatprep.subr.bf16.mxu0 0
    %190 = vmatpush1.bf16.msra.mxu0 %v170
    %191 = vmatprep.subr.bf16.mxu0 0
    %192 = vmatpush1.bf16.msra.mxu0 %v171
    %193 = vmatprep.subr.bf16.mxu0 0
    %194 = vmatpush1.bf16.msra.mxu0 %v172
    %195 = vmatprep.subr.bf16.mxu0 0
    %196 = vmatpush1.bf16.msra.mxu0 %v173
    %197 = vmatprep.subr.bf16.mxu0 0
    %198 = vmatpush1.bf16.msra.mxu0 %v174
    %199 = vmatprep.subr.bf16.mxu0 0
    %200 = vmatpush1.bf16.msra.mxu0 0
    %201 = vmatprep.subr.bf16.mxu0 0
    %202 = vmatpush1.bf16.msra.mxu0 0
    %203 = vmatprep.subr.bf16.mxu0 0
    %204 = vmatpush1.bf16.msra.mxu0 0
    %205 = vmatprep.subr.bf16.mxu0 0
    %206 = vmatpush1.bf16.msra.mxu0 0
    %207 = vmatprep.subr.bf16.mxu0 0
    %208 = vmatpush1.bf16.msra.mxu0 0
    %209 = vmatprep.subr.bf16.mxu0 0
    %210 = vmatpush1.bf16.msra.mxu0 0
    %211 = vmatprep.subr.bf16.mxu0 0
    %212 = vmatpush1.bf16.msra.mxu0 0
    %213 = vmatprep.subr.bf16.mxu0 0
    %214 = vmatpush1.bf16.msra.mxu0 0
    %215 = vmatprep.mubr.bf16.mxu0 0
    %216 = vmatmul.mubr.bf16.gmra.mrb[0].mxu0 %v111
    %v217 = vpop.f32.mrb[0].mxu0
    %v218 = vadd.f32 %v133, %v217
    %v219 = vpop.f32.mrb[0].mxu0
    %v220 = vpop.f32.mrb[0].mxu0
    %v221 = vpop.f32.mrb[0].mxu0
    %222 = vdwg.mxu0
    %v223 = vmax.f32 %v218, 0.0
    %v224 = vrot.slane %v223, 4
    %v225 = vadd.f32 %v223, %v224
    %v226 = vrot.slane %v225, 2
    %v227 = vadd.f32 %v225, %v226
    %v228 = vrot.slane %v227, 1
    %v229 = vadd.f32 %v227, %v228
    %v230 = vrcp.pop 8.0
    %v231 = vmul.f32 %v229, %v230
    %v232 = vmul.f32 %v223, %v223
    %v233 = vrot.slane %v232, 4
    %v234 = vadd.f32 %v232, %v233
    %v235 = vrot.slane %v234, 2
    %v236 = vadd.f32 %v234, %v235
    %v237 = vrot.slane %v236, 1
    %v238 = vadd.f32 %v236, %v237
    %v239 = vmul.f32 %v238, %v230
    %v240 = vmul.f32 %v231, %v231
    %v241 = vsub.f32 %v239, %v240
    %v242 = vmax.f32 %v241, 0.0
    %v243 = vsub.f32 %v223, %v231
    %v244 = vadd.f32 %v242, 1e-05
    %v245 = vrsqrt.pop %v244
    %v246 = vmul.f32 %v243, %v245
    %v247 = vld [vmem:[%s3] sm:$0x1]
    %v249 = vlaneseq
    %v250 = vshrl.u32 %v249, 7
    %v251 = vsub.s32 0, %v250
    %v252 = vrot.slane %v247, %v251
    %v254 = vmul.f32 %v246, %v252
    %v255 = vld [vmem:[#allocation7] sm:$0x1]
    %v257 = vlaneseq
    %v258 = vshrl.u32 %v257, 7
    %v259 = vsub.s32 0, %v258
    %v260 = vrot.slane %v255, %v259
    %v262 = vadd.f32 %v254, %v260
    %v263 = vld [vmem:[%s5] sm:$0xff]
    %v264 = vmul.f32 %v262, %v263
    %v265 = vpack.c.bf16 %v264, %v264
    %v266 = vld [vmem:[#allocation8] sm:$0xf]
    %v267 = vld [vmem:[#allocation8 + $0x4] sm:$0xf]
    %v268 = vld [vmem:[#allocation8 + $0x8] sm:$0xf]
    %v269 = vld [vmem:[#allocation8 + $0xc] sm:$0xf]
    %v270 = vld [vmem:[#allocation8 + $0x10] sm:$0xf]
    %v271 = vld [vmem:[#allocation8 + $0x14] sm:$0xf]
    %v272 = vld [vmem:[#allocation8 + $0x18] sm:$0xf]
    %v273 = vld [vmem:[#allocation8 + $0x1c] sm:$0xf]
    %v274 = vld [vmem:[#allocation8 + $0x20] sm:$0xf]
    %v275 = vld [vmem:[#allocation8 + $0x24] sm:$0xf]
    %v276 = vld [vmem:[#allocation8 + $0x28] sm:$0xf]
    %v277 = vld [vmem:[#allocation8 + $0x2c] sm:$0xf]
    %v278 = vld [vmem:[#allocation8 + $0x30] sm:$0xf]
    %v279 = vld [vmem:[#allocation8 + $0x34] sm:$0xf]
    %v280 = vld [vmem:[#allocation8 + $0x38] sm:$0xf]
    %v281 = vld [vmem:[#allocation8 + $0x3c] sm:$0xf]
    %v282 = vld [vmem:[%s7] sm:$0x1]
    %v284 = vlaneseq
    %v285 = vshrl.u32 %v284, 7
    %v286 = vsub.s32 0, %v285
    %v287 = vrot.slane %v282, %v286
    %v305 = vunpack.c.l.b16 %v266
    %v306 = vunpack.c.l.b16 %v267
    %v307 = vunpack.c.l.b16 %v268
    %v308 = vunpack.c.l.b16 %v269
    %v309 = vunpack.c.l.b16 %v270
    %v310 = vunpack.c.l.b16 %v271
    %v311 = vunpack.c.l.b16 %v272
    %v312 = vunpack.c.l.b16 %v273
    %v313 = vunpack.c.l.b16 %v274
    %v314 = vunpack.c.l.b16 %v275
    %v315 = vunpack.c.l.b16 %v276
    %v316 = vunpack.c.l.b16 %v277
    %v317 = vunpack.c.l.b16 %v278
    %v318 = vunpack.c.l.b16 %v279
    %v319 = vunpack.c.l.b16 %v280
    %v320 = vunpack.c.l.b16 %v281
    %v321 = vpack.c.b16 %v306, %v305
    %v322 = vpack.c.b16 %v308, %v307
    %v323 = vpack.c.b16 %v310, %v309
    %v324 = vpack.c.b16 %v312, %v311
    %v325 = vpack.c.b16 %v314, %v313
    %v326 = vpack.c.b16 %v316, %v315
    %v327 = vpack.c.b16 %v318, %v317
    %v328 = vpack.c.b16 %v320, %v319
    %337 = vmatprep.subr.bf16.mxu0 0
    %338 = vmatpush1.bf16.msra.mxu0 %v321
    %339 = vmatprep.subr.bf16.mxu0 0
    %340 = vmatpush1.bf16.msra.mxu0 %v322
    %341 = vmatprep.subr.bf16.mxu0 0
    %342 = vmatpush1.bf16.msra.mxu0 %v323
    %343 = vmatprep.subr.bf16.mxu0 0
    %344 = vmatpush1.bf16.msra.mxu0 %v324
    %345 = vmatprep.subr.bf16.mxu0 0
    %346 = vmatpush1.bf16.msra.mxu0 %v325
    %347 = vmatprep.subr.bf16.mxu0 0
    %348 = vmatpush1.bf16.msra.mxu0 %v326
    %349 = vmatprep.subr.bf16.mxu0 0
    %350 = vmatpush1.bf16.msra.mxu0 %v327
    %351 = vmatprep.subr.bf16.mxu0 0
    %352 = vmatpush1.bf16.msra.mxu0 %v328
    %353 = vmatprep.subr.bf16.mxu0 0
    %354 = vmatpush1.bf16.msra.mxu0 0
    %355 = vmatprep.subr.bf16.mxu0 0
    %356 = vmatpush1.bf16.msra.mxu0 0
    %357 = vmatprep.subr.bf16.mxu0 0
    %358 = vmatpush1.bf16.msra.mxu0 0
    %359 = vmatprep.subr.bf16.mxu0 0
    %360 = vmatpush1.bf16.msra.mxu0 0
    %361 = vmatprep.subr.bf16.mxu0 0
    %362 = vmatpush1.bf16.msra.mxu0 0
    %363 = vmatprep.subr.bf16.mxu0 0
    %364 = vmatpush1.bf16.msra.mxu0 0
    %365 = vmatprep.subr.bf16.mxu0 0
    %366 = vmatpush1.bf16.msra.mxu0 0
    %367 = vmatprep.subr.bf16.mxu0 0
    %368 = vmatpush1.bf16.msra.mxu0 0
    %369 = vmatprep.mubr.bf16.mxu0 0
    %370 = vmatmul.mubr.bf16.gmra.mrb[0].mxu0 %v265
    %v371 = vpop.f32.mrb[0].mxu0
    %v372 = vadd.f32 %v287, %v371
    %v373 = vpop.f32.mrb[0].mxu0
    %v374 = vpop.f32.mrb[0].mxu0
    %v375 = vpop.f32.mrb[0].mxu0
    %376 = vdwg.mxu0
    %v377 = vmax.f32 %v372, 0.0
    %v378 = vrot.slane %v377, 4
    %v379 = vadd.f32 %v377, %v378
    %v380 = vrot.slane %v379, 2
    %v381 = vadd.f32 %v379, %v380
    %v382 = vrot.slane %v381, 1
    %v383 = vadd.f32 %v381, %v382
    %v384 = vmul.f32 %v383, %v230
    %v385 = vmul.f32 %v377, %v377
    %v386 = vrot.slane %v385, 4
    %v387 = vadd.f32 %v385, %v386
    %v388 = vrot.slane %v387, 2
    %v389 = vadd.f32 %v387, %v388
    %v390 = vrot.slane %v389, 1
    %v391 = vadd.f32 %v389, %v390
    %v392 = vmul.f32 %v391, %v230
    %v393 = vmul.f32 %v384, %v384
    %v394 = vsub.f32 %v392, %v393
    %v395 = vmax.f32 %v394, 0.0
    %v396 = vsub.f32 %v377, %v384
    %v397 = vadd.f32 %v395, 1e-05
    %v398 = vrsqrt.pop %v397
    %v399 = vmul.f32 %v396, %v398
    %v400 = vld [vmem:[%s8] sm:$0x1]
    %v402 = vlaneseq
    %v403 = vshrl.u32 %v402, 7
    %v404 = vsub.s32 0, %v403
    %v405 = vrot.slane %v400, %v404
    %v407 = vmul.f32 %v399, %v405
    %v408 = vld [vmem:[%s9] sm:$0x1]
    %v410 = vlaneseq
    %v411 = vshrl.u32 %v410, 7
    %v412 = vsub.s32 0, %v411
    %v413 = vrot.slane %v408, %v412
    %v415 = vadd.f32 %v407, %v413
    %v416 = vld [vmem:[%s10] sm:$0xff]
    %v417 = vmul.f32 %v415, %v416
    %v418 = vpack.c.bf16 %v417, %v417
    %v419 = vld [vmem:[#allocation10] sm:$0xf]
    %v420 = vld [vmem:[#allocation10 + $0x4] sm:$0xf]
    %v421 = vld [vmem:[#allocation10 + $0x8] sm:$0xf]
    %v422 = vld [vmem:[#allocation10 + $0xc] sm:$0xf]
    %v423 = vld [vmem:[#allocation10 + $0x10] sm:$0xf]
    %v424 = vld [vmem:[#allocation10 + $0x14] sm:$0xf]
    %v425 = vld [vmem:[#allocation10 + $0x18] sm:$0xf]
    %v426 = vld [vmem:[#allocation10 + $0x1c] sm:$0xf]
    %v427 = vld [vmem:[#allocation10 + $0x20] sm:$0xf]
    %v428 = vld [vmem:[#allocation10 + $0x24] sm:$0xf]
    %v429 = vld [vmem:[#allocation10 + $0x28] sm:$0xf]
    %v430 = vld [vmem:[#allocation10 + $0x2c] sm:$0xf]
    %v431 = vld [vmem:[#allocation10 + $0x30] sm:$0xf]
    %v432 = vld [vmem:[#allocation10 + $0x34] sm:$0xf]
    %v433 = vld [vmem:[#allocation10 + $0x38] sm:$0xf]
    %v434 = vld [vmem:[#allocation10 + $0x3c] sm:$0xf]
    %v435 = vld [vmem:[%s12] sm:$0x1]
    %v437 = vlaneseq
    %v438 = vshrl.u32 %v437, 7
    %v439 = vsub.s32 0, %v438
    %v440 = vrot.slane %v435, %v439
    %v458 = vunpack.c.l.b16 %v419
    %v459 = vunpack.c.l.b16 %v420
    %v460 = vunpack.c.l.b16 %v421
    %v461 = vunpack.c.l.b16 %v422
    %v462 = vunpack.c.l.b16 %v423
    %v463 = vunpack.c.l.b16 %v424
    %v464 = vunpack.c.l.b16 %v425
    %v465 = vunpack.c.l.b16 %v426
    %v466 = vunpack.c.l.b16 %v427
    %v467 = vunpack.c.l.b16 %v428
    %v468 = vunpack.c.l.b16 %v429
    %v469 = vunpack.c.l.b16 %v430
    %v470 = vunpack.c.l.b16 %v431
    %v471 = vunpack.c.l.b16 %v432
    %v472 = vunpack.c.l.b16 %v433
    %v473 = vunpack.c.l.b16 %v434
    %v474 = vpack.c.b16 %v459, %v458
    %v475 = vpack.c.b16 %v461, %v460
    %v476 = vpack.c.b16 %v463, %v462
    %v477 = vpack.c.b16 %v465, %v464
    %v478 = vpack.c.b16 %v467, %v466
    %v479 = vpack.c.b16 %v469, %v468
    %v480 = vpack.c.b16 %v471, %v470
    %v481 = vpack.c.b16 %v473, %v472
    %490 = vmatprep.subr.bf16.mxu0 0
    %491 = vmatpush1.bf16.msra.mxu0 %v474
    %492 = vmatprep.subr.bf16.mxu0 0
    %493 = vmatpush1.bf16.msra.mxu0 %v475
    %494 = vmatprep.subr.bf16.mxu0 0
    %495 = vmatpush1.bf16.msra.mxu0 %v476
    %496 = vmatprep.subr.bf16.mxu0 0
    %497 = vmatpush1.bf16.msra.mxu0 %v477
    %498 = vmatprep.subr.bf16.mxu0 0
    %499 = vmatpush1.bf16.msra.mxu0 %v478
    %500 = vmatprep.subr.bf16.mxu0 0
    %501 = vmatpush1.bf16.msra.mxu0 %v479
    %502 = vmatprep.subr.bf16.mxu0 0
    %503 = vmatpush1.bf16.msra.mxu0 %v480
    %504 = vmatprep.subr.bf16.mxu0 0
    %505 = vmatpush1.bf16.msra.mxu0 %v481
    %506 = vmatprep.subr.bf16.mxu0 0
    %507 = vmatpush1.bf16.msra.mxu0 0
    %508 = vmatprep.subr.bf16.mxu0 0
    %509 = vmatpush1.bf16.msra.mxu0 0
    %510 = vmatprep.subr.bf16.mxu0 0
    %511 = vmatpush1.bf16.msra.mxu0 0
    %512 = vmatprep.subr.bf16.mxu0 0
    %513 = vmatpush1.bf16.msra.mxu0 0
    %514 = vmatprep.subr.bf16.mxu0 0
    %515 = vmatpush1.bf16.msra.mxu0 0
    %516 = vmatprep.subr.bf16.mxu0 0
    %517 = vmatpush1.bf16.msra.mxu0 0
    %518 = vmatprep.subr.bf16.mxu0 0
    %519 = vmatpush1.bf16.msra.mxu0 0
    %520 = vmatprep.subr.bf16.mxu0 0
    %521 = vmatpush1.bf16.msra.mxu0 0
    %522 = vmatprep.mubr.bf16.mxu0 0
    %523 = vmatmul.mubr.bf16.gmra.mrb[0].mxu0 %v418
    %v524 = vpop.f32.mrb[0].mxu0
    %v525 = vadd.f32 %v440, %v524
    %v526 = vpop.f32.mrb[0].mxu0
    %v527 = vpop.f32.mrb[0].mxu0
    %v528 = vpop.f32.mrb[0].mxu0
    %529 = vdwg.mxu0
    %530 = vst [vmem:[#allocation11] sm:$0xff] %v525
    // Predicated region
    $region74: #{tpu_custom_call.1} parent=1 // pred_check
      _
    $region75: #{tpu_custom_call.1} parent=1 // pred_check_branch
      %532 = sbr.rel (0) target = $region77
    $region76: #{tpu_custom_call.1} parent=1 // pred_region
      %s534 = ssub.s32 128, 128
      %535 = vsyncadd [#allocation4], %s534
      %s537 = sshll.u32 [#allocation11], 4
      %s538 = int_to_ptr.vmem [resolvable:$true] %s537
      %540 = dma.vmem_to_hbm [thread:$0]  %s538, 128, %s13, [#allocation4]
    $region77: #{tpu_custom_call.1} parent=1 // pred_fallthru
      _
    // Predicated region
    $region78: #{tpu_custom_call.1} parent=1 // pred_check
      _
    $region79: #{tpu_custom_call.1} parent=1 // pred_check_branch
      %542 = sbr.rel (0) target = $region81
    $region80: #{tpu_custom_call.1} parent=1 // pred_region
      %543 = dma.done [#allocation4], 128
    $region81: #{tpu_custom_call.1} parent=1 // pred_fallthru
      _
    %544 = vsyncpa [#allocation3], 1
    %545 = vsyncpa [#allocation6], 1
    %546 = vsyncpa [#allocation9], 1
    %547 = vsyncpa [#allocation4], 1

</llo_original>
